<compile_context>
chip_gen: v6e
topology: v6e:2x2x1
jax: 0.10.0
libtpu: 0.0.40
codegen_flags: <defaults>
</compile_context>

<pallas_src>
import jax
import jax.numpy as jnp
from jax import lax
from jax.experimental import pallas as pl
from jax.experimental.pallas import tpu as pltpu

_VMEM_LIMIT_BYTES = 48 * 1024 * 1024   # safe headroom on v7x (64 MiB physical)


def _pick_tile(dim, target, quantum):
    """Largest divisor of `dim` that is <= target and a multiple of quantum, else dim."""
    if dim <= target:
        return dim
    t = (target // quantum) * quantum
    while t >= quantum:
        if dim % t == 0:
            return t
        t -= quantum
    return dim


# ----------------------------------------------------------------------------
# Kernel 1: tiled input projection  gates_pre = x_flat @ W_ih_fused + bias
#   x_flat : (M, K) bf16   w : (K, 8H) bf16   bias : (1, 8H) f32
#   output : (M, 8H) bf16  (f32 accumulation in VMEM scratch)
# ----------------------------------------------------------------------------
def _input_proj_kernel(x_ref, w_ref, b_ref, out_ref, acc_ref):
    k = pl.program_id(2)

    @pl.when(k == 0)
    def _():
        acc_ref[...] = jnp.zeros_like(acc_ref)

    acc_ref[...] += jnp.dot(x_ref[...], w_ref[...],
                            preferred_element_type=jnp.float32)

    @pl.when(k == pl.num_programs(2) - 1)
    def _():
        out_ref[...] = (acc_ref[...] + b_ref[...]).astype(out_ref.dtype)


def input_projection(x_flat, w_fused, bias):
    M, K = x_flat.shape
    N = w_fused.shape[1]
    TM = _pick_tile(M, 512, 8)
    TN = _pick_tile(N, 512, 128)
    TK = _pick_tile(K, 2048, 128)
    grid = (M // TM, N // TN, K // TK)
    return pl.pallas_call(
        _input_proj_kernel,
        grid=grid,
        in_specs=[
            pl.BlockSpec((TM, TK), lambda i, j, k: (i, k)),
            pl.BlockSpec((TK, TN), lambda i, j, k: (k, j)),
            pl.BlockSpec((1, TN), lambda i, j, k: (0, j)),
        ],
        out_specs=pl.BlockSpec((TM, TN), lambda i, j, k: (i, j)),
        out_shape=jax.ShapeDtypeStruct((M, N), jnp.bfloat16),
        scratch_shapes=[pltpu.VMEM((TM, TN), jnp.float32)],
        compiler_params=pltpu.CompilerParams(
            dimension_semantics=("parallel", "parallel", "arbitrary"),
            vmem_limit_bytes=_VMEM_LIMIT_BYTES),
    )(x_flat, w_fused, bias)


# ----------------------------------------------------------------------------
# Kernel 2: fused bidirectional LSTM recurrence for one layer.
#   gates_ref : (seq, Bp, 8H) bf16  x@W_ih + (b_ih+b_hh), interleaved gate cols
#               [i_f i_r | f_f f_r | o_f o_r | g_f g_r] (both dirs from x_t)
#   whh_ref   : (2H, 8H)   bf16    block-structured recurrent weights
#   mask_ref  : (1, 8H)    f32     1.0 at forward-direction columns
#   out_ref   : (seq, Bp, 2H) bf16 fwd h -> cols [0:H], rev h -> cols [H:2H]
# One MXU dot, one sigmoid(6H), one tanh(2H), one tanh(c) per step.
# h/c carried in registers (fori_loop carry) -> no per-step scratch traffic.
# ----------------------------------------------------------------------------
def _bilstm_seq_kernel(gates_ref, whh_ref, mask_ref, out_ref):
    seq, Bp, G8 = gates_ref.shape
    H = whh_ref.shape[0] // 2

    whh = whh_ref[...]                                    # (2H, 8H) bf16
    # Hoist broadcast out of the loop (JAX does not CSE broadcast_in_dim).
    fwd_mask = jnp.broadcast_to(mask_ref[...] > 0.5, (Bp, G8))

    def body(t, carry):
        h_cat, c_cat = carry
        tr = seq - 1 - t
        # fwd gates from time t, rev gates from time seq-1-t (single vsel).
        pre = jnp.where(fwd_mask, gates_ref[t], gates_ref[tr]).astype(jnp.float32)
        gates = pre + jnp.dot(h_cat.astype(jnp.bfloat16), whh,
                              preferred_element_type=jnp.float32)
        s = jax.nn.sigmoid(gates[:, :6 * H])               # [i_f i_r f_f f_r o_f o_r]
        g = jnp.tanh(gates[:, 6 * H:])                     # [g_f g_r]
        i_cat = s[:, 0 * H:2 * H]
        f_cat = s[:, 2 * H:4 * H]
        o_cat = s[:, 4 * H:6 * H]
        c_cat = f_cat * c_cat + i_cat * g
        h_cat = o_cat * jnp.tanh(c_cat)
        out_ref[t, :, :H] = h_cat[:, :H].astype(out_ref.dtype)
        out_ref[tr, :, H:] = h_cat[:, H:].astype(out_ref.dtype)
        return (h_cat, c_cat)

    z = jnp.zeros((Bp, 2 * H), jnp.float32)
    unroll = True if seq <= 16 else 8
    lax.fori_loop(0, seq, body, (z, z), unroll=unroll)


def bilstm_layer(x, layer_p, dir_mask, hidden_dim):
    """x: (seq, Bp, IN) bf16; layer_p: dict with precomputed fused weights."""
    H = hidden_dim
    seq, Bp, IN = x.shape
    gates = input_projection(x.reshape(seq * Bp, IN), layer_p["w_ih"],
                             layer_p["bias"])
    gates = gates.reshape(seq, Bp, 8 * H)
    return pl.pallas_call(
        _bilstm_seq_kernel,
        out_shape=jax.ShapeDtypeStruct((seq, Bp, 2 * H), jnp.bfloat16),
        compiler_params=pltpu.CompilerParams(
            vmem_limit_bytes=_VMEM_LIMIT_BYTES),
    )(gates, layer_p["w_hh"], dir_mask)


# ----------------------------------------------------------------------------
# Kernel 3: MLP head  linear_1 -> relu -> linear_2 -> relu -> predictor
# Fuses cat((lstm_out[0], lstm_out[-1])) via two BlockSpecs + split W1.
# ----------------------------------------------------------------------------
def _mlp_head_kernel(x0_ref, xl_ref, w1a_ref, w1b_ref, b1_ref, w2_ref, b2_ref,
                     wp_ref, bp_ref, out_ref):
    x0 = x0_ref[0]                                          # (Bp, 2H) bf16
    xl = xl_ref[0]
    h = (jnp.dot(x0, w1a_ref[...], preferred_element_type=jnp.float32)
         + jnp.dot(xl, w1b_ref[...], preferred_element_type=jnp.float32)
         + b1_ref[...])
    h = jnp.maximum(h, 0.0)
    h = jnp.dot(h.astype(jnp.bfloat16), w2_ref[...],
                preferred_element_type=jnp.float32) + b2_ref[...]
    h = jnp.maximum(h, 0.0)
    out = jnp.dot(h.astype(jnp.bfloat16), wp_ref[...],
                  preferred_element_type=jnp.float32) + bp_ref[...]
    out_ref[...] = out.astype(out_ref.dtype)


def mlp_head(x_slab, head_p):
    seq, Bp, H2 = x_slab.shape
    w1a, w1b, b1 = head_p["w1a"], head_p["w1b"], head_p["b1"]
    w2, b2 = head_p["w2"], head_p["b2"]
    wp, bp = head_p["wp"], head_p["bp"]
    out_dim = wp.shape[1]
    return pl.pallas_call(
        _mlp_head_kernel,
        grid=(1,),
        in_specs=[
            pl.BlockSpec((1, Bp, H2), lambda i: (0, 0, 0)),        # lstm_out[0]
            pl.BlockSpec((1, Bp, H2), lambda i: (seq - 1, 0, 0)),  # lstm_out[-1]
            pl.BlockSpec(w1a.shape, lambda i: (0, 0)),
            pl.BlockSpec(w1b.shape, lambda i: (0, 0)),
            pl.BlockSpec(b1.shape, lambda i: (0, 0)),
            pl.BlockSpec(w2.shape, lambda i: (0, 0)),
            pl.BlockSpec(b2.shape, lambda i: (0, 0)),
            pl.BlockSpec(wp.shape, lambda i: (0, 0)),
            pl.BlockSpec(bp.shape, lambda i: (0, 0)),
        ],
        out_specs=pl.BlockSpec((Bp, out_dim), lambda i: (0, 0)),
        out_shape=jax.ShapeDtypeStruct((Bp, out_dim), jnp.float32),
        compiler_params=pltpu.CompilerParams(
            dimension_semantics=("arbitrary",),
            vmem_limit_bytes=_VMEM_LIMIT_BYTES),
    )(x_slab, x_slab, w1a, w1b, b1, w2, b2, wp, bp)


# ----------------------------------------------------------------------------
# Parameter init (deterministic, PyTorch-style uniform ranges; PyTorch layout)
# ----------------------------------------------------------------------------
def init_params(key, vocab_size, emb_dim, hidden_dim, n_layers, output_dim,
                pad_idx=0):
    H = hidden_dim
    ks = iter(jax.random.split(key, 64))
    u = lambda k, shape, bound: jax.random.uniform(
        k, shape, jnp.float32, -bound, bound)

    params = {}
    emb = jax.random.normal(next(ks), (vocab_size, emb_dim), jnp.float32)
    emb = emb.at[pad_idx].set(0.0)                      # padding_idx row -> 0
    params["embedding"] = emb

    kb = 1.0 / jnp.sqrt(H)
    lstm = []
    for layer in range(n_layers):
        in_dim = emb_dim if layer == 0 else 2 * H
        dirs = []
        for _d in range(2):                              # bidirectional
            wih = u(next(ks), (4 * H, in_dim), kb)
            whh = u(next(ks), (4 * H, H), kb)
            bih = u(next(ks), (4 * H,), kb)
            bhh = u(next(ks), (4 * H,), kb)
            dirs.append((wih, whh, bih, bhh))
        lstm.append(dirs)
    params["lstm"] = lstm

    def linear(kw, kbias, out_d, in_d):
        bound = 1.0 / jnp.sqrt(in_d)
        return u(kw, (out_d, in_d), bound), u(kbias, (out_d,), bound)

    params["linear_1"] = linear(next(ks), next(ks), 2 * H, 4 * H)
    params["linear_2"] = linear(next(ks), next(ks), H, 2 * H)
    params["predictor"] = linear(next(ks), next(ks), output_dim, H)
    return params


# ----------------------------------------------------------------------------
# One-time weight fusion / permutation (NOT done inside the forward pass)
# Gate column layout (8H wide): [i_f i_r | f_f f_r | o_f o_r | g_f g_r]
# ----------------------------------------------------------------------------
def prepare_inference_params(params, hidden_dim):
    H = hidden_dim

    def place(mat_t, d):
        """mat_t: (..., 4H) PyTorch gate order [i,f,g,o] -> (..., 8H) interleaved."""
        zero = jnp.zeros_like(mat_t[..., :H])
        blocks = [zero] * 8
        for m, pt in enumerate((0, 1, 3, 2)):            # new order [i,f,o,g]
            blocks[2 * m + d] = mat_t[..., pt * H:(pt + 1) * H]
        return jnp.concatenate(blocks, axis=-1)

    prepared = {"embedding": params["embedding"], "lstm": []}
    for dirs in params["lstm"]:
        (wih_f, whh_f, bih_f, bhh_f), (wih_r, whh_r, bih_r, bhh_r) = dirs
        w_ih = place(wih_f.T, 0) + place(wih_r.T, 1)                 # (IN, 8H)
        w_hh = jnp.concatenate([place(whh_f.T, 0), place(whh_r.T, 1)],
                               axis=0)                               # (2H, 8H)
        bias = (place((bih_f + bhh_f).reshape(1, -1), 0)
                + place((bih_r + bhh_r).reshape(1, -1), 1))          # (1, 8H)
        prepared["lstm"].append({
            "w_ih": w_ih.astype(jnp.bfloat16),
            "w_hh": w_hh.astype(jnp.bfloat16),
            "bias": bias.astype(jnp.float32),
        })

    prepared["dir_mask"] = place(jnp.ones((1, 4 * H), jnp.float32), 0)

    (w1, b1) = params["linear_1"]
    (w2, b2) = params["linear_2"]
    (wp, bp) = params["predictor"]
    w1t = w1.T
    prepared["head"] = {
        "w1a": w1t[:2 * H].astype(jnp.bfloat16),   # multiplies lstm_out[0]
        "w1b": w1t[2 * H:].astype(jnp.bfloat16),   # multiplies lstm_out[-1]
        "b1": b1.reshape(1, -1).astype(jnp.float32),
        "w2": w2.T.astype(jnp.bfloat16),
        "b2": b2.reshape(1, -1).astype(jnp.float32),
        "wp": wp.T.astype(jnp.bfloat16),
        "bp": bp.reshape(1, -1).astype(jnp.float32),
    }
    return prepared


# ----------------------------------------------------------------------------
# Full forward (inference)
# ----------------------------------------------------------------------------
def lstm_forward(prepared, input_ids, hidden_dim):
    H = hidden_dim
    B, seq = input_ids.shape

    # embedding lookup on (seq, batch) ids -> (seq, B, emb_dim)   (XLA glue)
    x = jnp.take(prepared["embedding"], input_ids.T, axis=0).astype(jnp.float32)

    # pad batch to 8 sublanes; padded rows are discarded at the end
    Bp = max(8, ((B + 7) // 8) * 8)
    if Bp != B:
        x = jnp.pad(x, ((0, 0), (0, Bp - B), (0, 0)))
    x = x.astype(jnp.bfloat16)

    for layer_p in prepared["lstm"]:
        x = bilstm_layer(x, layer_p, prepared["dir_mask"], H)   # (seq, Bp, 2H) bf16

    out = mlp_head(x, prepared["head"])                         # (Bp, out_dim) f32
    return out[:B]


# ----------------------------------------------------------------------------
# Pure-JAX reference (PyTorch gate order / per-direction scans).  With
# matmul_dtype=bfloat16 it mirrors the kernel's quantization points (bf16
# matmul operands, bf16 gates slab / activation slabs, f32 accumulation).
# ----------------------------------------------------------------------------
def reference_forward(params, input_ids, hidden_dim, matmul_dtype=jnp.float32):
    H = hidden_dim
    f32 = jnp.float32
    rnd = lambda a: a.astype(matmul_dtype).astype(f32)
    mm = lambda a, b: jnp.dot(a.astype(matmul_dtype), b.astype(matmul_dtype),
                              preferred_element_type=f32)

    x = jnp.take(params["embedding"], input_ids.T, axis=0).astype(f32)
    x = rnd(x)

    for dirs in params["lstm"]:
        seq, B, IN = x.shape
        outs = []
        for d, (wih, whh, bih, bhh) in enumerate(dirs):
            b = (bih + bhh).astype(f32)
            gp = rnd(mm(x.reshape(seq * B, IN), wih.T) + b).reshape(seq, B, 4 * H)
            xs = gp[::-1] if d == 1 else gp

            def step(carry, gp_t):
                h, c = carry
                gates = gp_t + mm(h, whh.T)
                i = jax.nn.sigmoid(gates[:, :H])
                f = jax.nn.sigmoid(gates[:, H:2 * H])
                g = jnp.tanh(gates[:, 2 * H:3 * H])
                o = jax.nn.sigmoid(gates[:, 3 * H:])
                c = f * c + i * g
                h = o * jnp.tanh(c)
                return (h, c), h

            z = jnp.zeros((B, H), f32)
            _, hs = lax.scan(step, (z, z), xs)
            if d == 1:
                hs = hs[::-1]
            outs.append(hs)
        x = rnd(jnp.concatenate(outs, axis=-1))

    hcat = jnp.concatenate([x[0], x[-1]], axis=-1)
    (w1, b1) = params["linear_1"]
    (w2, b2) = params["linear_2"]
    (wp, bp) = params["predictor"]
    h = jnp.maximum(mm(hcat, w1.T) + b1, 0.0)
    h = jnp.maximum(mm(h, w2.T) + b2, 0.0)
    return mm(h, wp.T) + bp


if __name__ == "__main__":
    batch, seq = 2, 8
    vocab_size, emb_dim, hidden_dim = 32, 16, 32
    n_layers, output_dim, pad_idx = 2, 4, 0

    key = jax.random.PRNGKey(0)
    k_param, k_ids = jax.random.split(key)
    params = init_params(k_param, vocab_size, emb_dim, hidden_dim, n_layers,
                         output_dim, pad_idx)
    prepared = prepare_inference_params(params, hidden_dim)
    input_ids = jax.random.randint(k_ids, (batch, seq), 0, vocab_size,
                                   dtype=jnp.int32)

    out = lstm_forward(prepared, input_ids, hidden_dim)
    out = jax.block_until_ready(out)

    # Compare against a reference that mirrors the bf16 matmul / slab precision;
    # structural bugs (gate order, direction/time alignment) would be O(0.1+).
    ref = jax.block_until_ready(
        reference_forward(params, input_ids, hidden_dim,
                          matmul_dtype=jnp.bfloat16))
    assert out.shape == (batch, output_dim)
    assert jnp.allclose(out, ref, atol=5e-3, rtol=5e-3), (out, ref)
    print("KERNEL_OK")
</pallas_src>

<mosaic_0001>
module attributes {stable_mosaic.version = 11 : i64} {
  func.func @_input_proj_kernel(%arg0: i32, %arg1: i32, %arg2: i32, %arg3: memref<64x16xbf16, #tpu.memory_space<vmem>>, %arg4: memref<16x256xbf16, #tpu.memory_space<vmem>>, %arg5: memref<1x256xf32, #tpu.memory_space<vmem>>, %arg6: memref<64x256xbf16, #tpu.memory_space<vmem>>, %arg7: memref<64x256xf32, #tpu.memory_space<vmem>>) attributes {dimension_semantics = [#tpu.dimension_semantics<parallel>, #tpu.dimension_semantics<parallel>, #tpu.dimension_semantics<arbitrary>], iteration_bounds = array<i64: 1, 1, 1>, scalar_prefetch = 0 : i64, scratch_operands = 1 : i64, tpu.core_type = #tpu.core_type<tc>, window_params = [{transform_indices = @transform_0, window_bounds = array<i64: 64, 16>}, {transform_indices = @transform_1, window_bounds = array<i64: 16, 256>}, {transform_indices = @transform_2, window_bounds = array<i64: 1, 256>}, {transform_indices = @transform_3, window_bounds = array<i64: 64, 256>}]} {
    %c0_i32 = arith.constant 0 : i32
    %0 = arith.cmpi eq, %arg2, %c0_i32 : i32
    %1 = arith.extui %0 : i1 to i32
    %c0_i32_0 = arith.constant 0 : i32
    %2 = arith.cmpi ne, %1, %c0_i32_0 : i32
    scf.if %2 {
      %cst_10 = arith.constant 0.000000e+00 : f32
      %12 = vector.broadcast %cst_10 : f32 to vector<64x256xf32>
      %c0_11 = arith.constant 0 : index
      %c0_12 = arith.constant 0 : index
      %13 = vector.load %arg7[%c0_11, %c0_12] : memref<64x256xf32, #tpu.memory_space<vmem>>, vector<64x256xf32>
      tpu.vector_store %arg7[%c0_11, %c0_12], %12 {strides = array<i32>} : memref<64x256xf32, #tpu.memory_space<vmem>>, vector<64x256xf32>,
    } else {
    }
    %c0 = arith.constant 0 : index
    %c0_1 = arith.constant 0 : index
    %3 = vector.load %arg7[%c0, %c0_1] : memref<64x256xf32, #tpu.memory_space<vmem>>, vector<64x256xf32>
    %c0_2 = arith.constant 0 : index
    %c0_3 = arith.constant 0 : index
    %4 = vector.load %arg3[%c0_2, %c0_3] : memref<64x16xbf16, #tpu.memory_space<vmem>>, vector<64x16xbf16>
    %c0_4 = arith.constant 0 : index
    %c0_5 = arith.constant 0 : index
    %5 = vector.load %arg4[%c0_4, %c0_5] : memref<16x256xbf16, #tpu.memory_space<vmem>>, vector<16x256xbf16>
    %cst = arith.constant dense<0.000000e+00> : vector<64x256xf32>
    %6 = tpu.matmul %4, %5, %cst {dimension_numbers = #tpu.dot_dimension_numbers<[1], [0], [0], [1], [0, 0, 1, 1], [], []>} : vector<64x16xbf16>, vector<16x256xbf16>, vector<64x256xf32> -> vector<64x256xf32>
    %7 = arith.addf %3, %6 : vector<64x256xf32>
    %c0_6 = arith.constant 0 : index
    %c0_7 = arith.constant 0 : index
    %8 = vector.load %arg7[%c0_6, %c0_7] : memref<64x256xf32, #tpu.memory_space<vmem>>, vector<64x256xf32>
    tpu.vector_store %arg7[%c0_6, %c0_7], %7 {strides = array<i32>} : memref<64x256xf32, #tpu.memory_space<vmem>>, vector<64x256xf32>,
    %c0_i32_8 = arith.constant 0 : i32
    %9 = arith.cmpi eq, %arg2, %c0_i32_8 : i32
    %10 = arith.extui %9 : i1 to i32
    %c0_i32_9 = arith.constant 0 : i32
    %11 = arith.cmpi ne, %10, %c0_i32_9 : i32
    scf.if %11 {
      %c0_10 = arith.constant 0 : index
      %c0_11 = arith.constant 0 : index
      %12 = vector.load %arg7[%c0_10, %c0_11] : memref<64x256xf32, #tpu.memory_space<vmem>>, vector<64x256xf32>
      %c0_12 = arith.constant 0 : index
      %c0_13 = arith.constant 0 : index
      %13 = vector.load %arg5[%c0_12, %c0_13] : memref<1x256xf32, #tpu.memory_space<vmem>>, vector<1x256xf32>
      %14 = vector.broadcast %13 : vector<1x256xf32> to vector<64x256xf32>
      %15 = arith.addf %12, %14 : vector<64x256xf32>
      %16 = arith.truncf %15 : vector<64x256xf32> to vector<64x256xbf16>
      %c0_14 = arith.constant 0 : index
      %c0_15 = arith.constant 0 : index
      %17 = vector.load %arg6[%c0_14, %c0_15] : memref<64x256xbf16, #tpu.memory_space<vmem>>, vector<64x256xbf16>
      tpu.vector_store %arg6[%c0_14, %c0_15], %16 {strides = array<i32>} : memref<64x256xbf16, #tpu.memory_space<vmem>>, vector<64x256xbf16>,
    } else {
    }
    return
  }
  func.func @transform_0(%arg0: i32, %arg1: i32, %arg2: i32) -> (i32, i32) {
    %c0_i32 = arith.constant 0 : i32
    return %arg0, %arg2 : i32, i32
  }
  func.func @transform_1(%arg0: i32, %arg1: i32, %arg2: i32) -> (i32, i32) {
    %c0_i32 = arith.constant 0 : i32
    return %arg2, %arg1 : i32, i32
  }
  func.func @transform_2(%arg0: i32, %arg1: i32, %arg2: i32) -> (i32, i32) {
    %c0_i32 = arith.constant 0 : i32
    %c0_i32_0 = arith.constant 0 : i32
    return %c0_i32, %arg1 : i32, i32
  }
  func.func @transform_3(%arg0: i32, %arg1: i32, %arg2: i32) -> (i32, i32) {
    %c0_i32 = arith.constant 0 : i32
    return %arg0, %arg1 : i32, i32
  }
}

</mosaic_0001>

<llo_original>
// kernel: tpu_custom_call.1
$region0: #{tpu_custom_call.1}
  #allocation0 [shape = 'u32[]', space=smem, size = 0x4, offset = 0x4, fixed_abs, tag = 'smem constant byte address 0x4 - core index']
  #allocation1 [shape = 'u32[144,128]{1,0:T(1,128)}', space=vmem, size = 0x12000, scoped, tag = 'internal scratch']
  #allocation2 [shape = 'f32[64,256]{1,0:T(8,128)}', space=vmem, size = 0x10000, scoped, tag = 'scratch operand']
  %s0 = inlined_call_operand.vmem [shape: bf16[64,16], index: 0, kind: input, shape index: {}]
  %s1 = inlined_call_operand.vmem [shape: bf16[16,256], index: 1, kind: input, shape index: {}]
  %s2 = inlined_call_operand.vmem [shape: f32[1,256], index: 2, kind: input, shape index: {}]
  %s3 = inlined_call_operand.hbm [shape: bf16[64,256], index: 3, kind: output, shape index: {}]
  %s4 = sld [smem:[#allocation0]]
  $region30: #{tpu_custom_call.1} parent=0
    _
  %s6 = ssub.s32 1, %s4
  %s7 = scalar_select 0, %s6, %s4
  $region1: #{tpu_custom_call.1} parent=0
    #allocation3 [shape = 'u8[32768]{0}', space=vmem, size = 0x8000, scoped, tag = 'output window, operand 0, single buffered']
    #allocation4 [shape = 's32[1]{0}', space=sflag, size = 0x4, scoped, tag = 'scoped memory for tpu_custom_call.1']
    %8 = vsyncpa [#allocation4], 0
    // Predicated region
    $region2: #{tpu_custom_call.1} parent=1 // pred_check
      _
    $region3: #{tpu_custom_call.1} parent=1 // pred_check_branch
      %10 = sbr.rel (0) target = $region5
    $region4: #{tpu_custom_call.1} parent=1 // pred_region
      _
    $region5: #{tpu_custom_call.1} parent=1 // pred_fallthru
      _
    // Predicated region
    $region6: #{tpu_custom_call.1} parent=1 // pred_check
      _
    $region7: #{tpu_custom_call.1} parent=1 // pred_check_branch
      %12 = sbr.rel (0) target = $region9
    $region8: #{tpu_custom_call.1} parent=1 // pred_region
      _
    $region9: #{tpu_custom_call.1} parent=1 // pred_fallthru
      _
    // Predicated region
    $region10: #{tpu_custom_call.1} parent=1 // pred_check
      _
    $region11: #{tpu_custom_call.1} parent=1 // pred_check_branch
      %14 = sbr.rel (0) target = $region13
    $region12: #{tpu_custom_call.1} parent=1 // pred_region
      _
    $region13: #{tpu_custom_call.1} parent=1 // pred_fallthru
      _
    %p16 = scmp.eq.s32.totalorder 0, 0
    // Predicated region
    $region14: #{tpu_custom_call.1} parent=1 // pred_check
      %p17 = pneg %p16
    $region15: #{tpu_custom_call.1} parent=1 // pred_check_branch
      %19 = sbr.rel (%p17) target = $region17
    $region16: #{tpu_custom_call.1} parent=1 // pred_region
      %20 = vst [vmem:[#allocation2] sm:$0xff] 0.0
      %21 = vst [vmem:[#allocation2 + $0x8] sm:$0xff] 0.0
      %22 = vst [vmem:[#allocation2 + $0x10] sm:$0xff] 0.0
      %23 = vst [vmem:[#allocation2 + $0x18] sm:$0xff] 0.0
      %24 = vst [vmem:[#allocation2 + $0x20] sm:$0xff] 0.0
      %25 = vst [vmem:[#allocation2 + $0x28] sm:$0xff] 0.0
      %26 = vst [vmem:[#allocation2 + $0x30] sm:$0xff] 0.0
      %27 = vst [vmem:[#allocation2 + $0x38] sm:$0xff] 0.0
      %28 = vst [vmem:[#allocation2 + $0x40] sm:$0xff] 0.0
      %29 = vst [vmem:[#allocation2 + $0x48] sm:$0xff] 0.0
      %30 = vst [vmem:[#allocation2 + $0x50] sm:$0xff] 0.0
      %31 = vst [vmem:[#allocation2 + $0x58] sm:$0xff] 0.0
      %32 = vst [vmem:[#allocation2 + $0x60] sm:$0xff] 0.0
      %33 = vst [vmem:[#allocation2 + $0x68] sm:$0xff] 0.0
      %34 = vst [vmem:[#allocation2 + $0x70] sm:$0xff] 0.0
      %35 = vst [vmem:[#allocation2 + $0x78] sm:$0xff] 0.0
    $region17: #{tpu_custom_call.1} parent=1 // pred_fallthru
      _
    %v36 = vld [vmem:[#allocation2] sm:$0xff]
    %v37 = vld [vmem:[#allocation2 + $0x8] sm:$0xff]
    %v38 = vld [vmem:[#allocation2 + $0x10] sm:$0xff]
    %v39 = vld [vmem:[#allocation2 + $0x18] sm:$0xff]
    %v40 = vld [vmem:[#allocation2 + $0x20] sm:$0xff]
    %v41 = vld [vmem:[#allocation2 + $0x28] sm:$0xff]
    %v42 = vld [vmem:[#allocation2 + $0x30] sm:$0xff]
    %v43 = vld [vmem:[#allocation2 + $0x38] sm:$0xff]
    %v44 = vld [vmem:[#allocation2 + $0x40] sm:$0xff]
    %v45 = vld [vmem:[#allocation2 + $0x48] sm:$0xff]
    %v46 = vld [vmem:[#allocation2 + $0x50] sm:$0xff]
    %v47 = vld [vmem:[#allocation2 + $0x58] sm:$0xff]
    %v48 = vld [vmem:[#allocation2 + $0x60] sm:$0xff]
    %v49 = vld [vmem:[#allocation2 + $0x68] sm:$0xff]
    %v50 = vld [vmem:[#allocation2 + $0x70] sm:$0xff]
    %v51 = vld [vmem:[#allocation2 + $0x78] sm:$0xff]
    %v52 = vld [vmem:[%s0] sm:$0xf]
    %v53 = vld [vmem:[%s0 + $0x4] sm:$0xf]
    %v54 = vld [vmem:[%s0 + $0x8] sm:$0xf]
    %v55 = vld [vmem:[%s0 + $0xc] sm:$0xf]
    %v56 = vld [vmem:[%s0 + $0x10] sm:$0xf]
    %v57 = vld [vmem:[%s0 + $0x14] sm:$0xf]
    %v58 = vld [vmem:[%s0 + $0x18] sm:$0xf]
    %v59 = vld [vmem:[%s0 + $0x1c] sm:$0xf]
    %v60 = vld [vmem:[%s1] sm:$0xff]
    %v61 = vld [vmem:[%s1 + $0x8] sm:$0xff]
    %v70 = vunpack.c.l.b16 %v52
    %v71 = vunpack.c.l.b16 %v53
    %v72 = vunpack.c.l.b16 %v54
    %v73 = vunpack.c.l.b16 %v55
    %v74 = vunpack.c.l.b16 %v56
    %v75 = vunpack.c.l.b16 %v57
    %v76 = vunpack.c.l.b16 %v58
    %v77 = vunpack.c.l.b16 %v59
    %v78 = vpack.c.b16 %v71, %v70
    %v79 = vpack.c.b16 %v73, %v72
    %v80 = vpack.c.b16 %v75, %v74
    %v81 = vpack.c.b16 %v77, %v76
    %v84 = vunpack.c.l.b16 %v60
    %v85 = vunpack.c.h.b16 %v60
    %v86 = vunpack.c.l.b16 %v61
    %v87 = vunpack.c.h.b16 %v61
    %v88 = vpack.c.b16 %v86, %v84
    %v89 = vpack.c.b16 %v87, %v85
    %vm92 = vcmask 130048
    %v94 = vsel %vm92, %v78, 0
    %v97 = vsel %vm92, %v79, 0
    %v100 = vsel %vm92, %v80, 0
    %v103 = vsel %vm92, %v81, 0
    %105 = vmatprep.subr.bf16.mxu0 0
    %106 = vmatpush1.bf16.msra.mxu0 0
    %107 = vmatprep.subr.bf16.mxu0 0
    %108 = vmatpush1.bf16.msra.mxu0 0
    %109 = vmatprep.subr.bf16.mxu0 0
    %110 = vmatpush1.bf16.msra.mxu0 0
    %111 = vmatprep.subr.bf16.mxu0 0
    %112 = vmatpush1.bf16.msra.mxu0 0
    %113 = vmatprep.subr.bf16.mxu0 0
    %114 = vmatpush1.bf16.msra.mxu0 0
    %115 = vmatprep.subr.bf16.mxu0 0
    %116 = vmatpush1.bf16.msra.mxu0 0
    %117 = vmatprep.subr.bf16.mxu0 0
    %118 = vmatpush1.bf16.msra.mxu0 0
    %119 = vmatprep.subr.bf16.mxu0 %v89
    %120 = vmatpush1.bf16.msra.mxu0 %v88
    %121 = vmatprep.subr.bf16.mxu0 0
    %122 = vmatpush2.bf16.msra.mxu0 0
    %123 = vmatprep.subr.bf16.mxu0 0
    %124 = vmatpush2.bf16.msra.mxu0 0
    %125 = vmatprep.subr.bf16.mxu0 0
    %126 = vmatpush2.bf16.msra.mxu0 0
    %127 = vmatprep.subr.bf16.mxu0 0
    %128 = vmatpush2.bf16.msra.mxu0 0
    %129 = vmatprep.subr.bf16.mxu0 0
    %130 = vmatpush2.bf16.msra.mxu0 0
    %131 = vmatprep.subr.bf16.mxu0 0
    %132 = vmatpush2.bf16.msra.mxu0 0
    %133 = vmatprep.subr.bf16.mxu0 0
    %134 = vmatpush2.bf16.msra.mxu0 0
    %135 = vmatprep.subr.bf16.mxu0 0
    %136 = vmatpush2.bf16.msra.mxu0 0
    %137 = vmatprep.mubr.bf16.mxu0 0
    %138 = vmatmul.mubr.bf16.gmra.mxu0 %v94
    %v139 = vpop.f32.mrf.mxu0
    %v140 = vadd.f32 0.0, %v139
    %v141 = vpop.f32.mrf.mxu0
    %v142 = vadd.f32 0.0, %v141
    %v143 = vpop.f32.mrf.mxu0
    %v144 = vadd.f32 0.0, %v143
    %v145 = vpop.f32.mrf.mxu0
    %v146 = vadd.f32 0.0, %v145
    %147 = vmatprep.mubr.bf16.mxu0 0
    %148 = vmatmul.mubr.bf16.gmra.mxu0 %v97
    %v149 = vpop.f32.mrf.mxu0
    %v150 = vadd.f32 0.0, %v149
    %v151 = vpop.f32.mrf.mxu0
    %v152 = vadd.f32 0.0, %v151
    %v153 = vpop.f32.mrf.mxu0
    %v154 = vadd.f32 0.0, %v153
    %v155 = vpop.f32.mrf.mxu0
    %v156 = vadd.f32 0.0, %v155
    %157 = vmatprep.mubr.bf16.mxu0 0
    %158 = vmatmul.mubr.bf16.gmra.mxu0 %v100
    %v159 = vpop.f32.mrf.mxu0
    %v160 = vadd.f32 0.0, %v159
    %v161 = vpop.f32.mrf.mxu0
    %v162 = vadd.f32 0.0, %v161
    %v163 = vpop.f32.mrf.mxu0
    %v164 = vadd.f32 0.0, %v163
    %v165 = vpop.f32.mrf.mxu0
    %v166 = vadd.f32 0.0, %v165
    %167 = vmatprep.mubr.bf16.mxu0 0
    %168 = vmatmul.mubr.bf16.gmra.mxu0 %v103
    %v169 = vpop.f32.mrf.mxu0
    %v170 = vadd.f32 0.0, %v169
    %v171 = vpop.f32.mrf.mxu0
    %v172 = vadd.f32 0.0, %v171
    %v173 = vpop.f32.mrf.mxu0
    %v174 = vadd.f32 0.0, %v173
    %v175 = vpop.f32.mrf.mxu0
    %v176 = vadd.f32 0.0, %v175
    %177 = vdwg.mxu0
    %v178 = vadd.f32 %v36, %v140
    %v179 = vadd.f32 %v37, %v142
    %v180 = vadd.f32 %v38, %v144
    %v181 = vadd.f32 %v39, %v146
    %v182 = vadd.f32 %v40, %v150
    %v183 = vadd.f32 %v41, %v152
    %v184 = vadd.f32 %v42, %v154
    %v185 = vadd.f32 %v43, %v156
    %v186 = vadd.f32 %v44, %v160
    %v187 = vadd.f32 %v45, %v162
    %v188 = vadd.f32 %v46, %v164
    %v189 = vadd.f32 %v47, %v166
    %v190 = vadd.f32 %v48, %v170
    %v191 = vadd.f32 %v49, %v172
    %v192 = vadd.f32 %v50, %v174
    %v193 = vadd.f32 %v51, %v176
    %194 = vst [vmem:[#allocation2] sm:$0xff] %v178
    %195 = vst [vmem:[#allocation2 + $0x8] sm:$0xff] %v179
    %196 = vst [vmem:[#allocation2 + $0x10] sm:$0xff] %v180
    %197 = vst [vmem:[#allocation2 + $0x18] sm:$0xff] %v181
    %198 = vst [vmem:[#allocation2 + $0x20] sm:$0xff] %v182
    %199 = vst [vmem:[#allocation2 + $0x28] sm:$0xff] %v183
    %200 = vst [vmem:[#allocation2 + $0x30] sm:$0xff] %v184
    %201 = vst [vmem:[#allocation2 + $0x38] sm:$0xff] %v185
    %202 = vst [vmem:[#allocation2 + $0x40] sm:$0xff] %v186
    %203 = vst [vmem:[#allocation2 + $0x48] sm:$0xff] %v187
    %204 = vst [vmem:[#allocation2 + $0x50] sm:$0xff] %v188
    %205 = vst [vmem:[#allocation2 + $0x58] sm:$0xff] %v189
    %206 = vst [vmem:[#allocation2 + $0x60] sm:$0xff] %v190
    %207 = vst [vmem:[#allocation2 + $0x68] sm:$0xff] %v191
    %208 = vst [vmem:[#allocation2 + $0x70] sm:$0xff] %v192
    %209 = vst [vmem:[#allocation2 + $0x78] sm:$0xff] %v193
    // Predicated region
    $region18: #{tpu_custom_call.1} parent=1 // pred_check
      %p210 = pneg %p16
    $region19: #{tpu_custom_call.1} parent=1 // pred_check_branch
      %212 = sbr.rel (%p210) target = $region21
    $region20: #{tpu_custom_call.1} parent=1 // pred_region
      %v213 = vld [vmem:[#allocation2] sm:$0xff]
      %v214 = vld [vmem:[#allocation2 + $0x8] sm:$0xff]
      %v215 = vld [vmem:[#allocation2 + $0x10] sm:$0xff]
      %v216 = vld [vmem:[#allocation2 + $0x18] sm:$0xff]
      %v217 = vld [vmem:[#allocation2 + $0x20] sm:$0xff]
      %v218 = vld [vmem:[#allocation2 + $0x28] sm:$0xff]
      %v219 = vld [vmem:[#allocation2 + $0x30] sm:$0xff]
      %v220 = vld [vmem:[#allocation2 + $0x38] sm:$0xff]
      %v221 = vld [vmem:[#allocation2 + $0x40] sm:$0xff]
      %v222 = vld [vmem:[#allocation2 + $0x48] sm:$0xff]
      %v223 = vld [vmem:[#allocation2 + $0x50] sm:$0xff]
      %v224 = vld [vmem:[#allocation2 + $0x58] sm:$0xff]
      %v225 = vld [vmem:[#allocation2 + $0x60] sm:$0xff]
      %v226 = vld [vmem:[#allocation2 + $0x68] sm:$0xff]
      %v227 = vld [vmem:[#allocation2 + $0x70] sm:$0xff]
      %v228 = vld [vmem:[#allocation2 + $0x78] sm:$0xff]
      %v229 = vld [vmem:[%s2] sm:$0x3]
      %v231 = vlaneseq
      %v232 = vshrl.u32 %v231, 7
      %v233 = vsub.s32 0, %v232
      %v234 = vrot.slane %v229, %v233
      %v235 = vlaneseq
      %v236 = vshrl.u32 %v235, 7
      %v237 = vsub.s32 1, %v236
      %v238 = vrot.slane %v229, %v237
      %v241 = vadd.f32 %v213, %v234
      %v242 = vadd.f32 %v214, %v238
      %v243 = vadd.f32 %v215, %v234
      %v244 = vadd.f32 %v216, %v238
      %v245 = vadd.f32 %v217, %v234
      %v246 = vadd.f32 %v218, %v238
      %v247 = vadd.f32 %v219, %v234
      %v248 = vadd.f32 %v220, %v238
      %v249 = vadd.f32 %v221, %v234
      %v250 = vadd.f32 %v222, %v238
      %v251 = vadd.f32 %v223, %v234
      %v252 = vadd.f32 %v224, %v238
      %v253 = vadd.f32 %v225, %v234
      %v254 = vadd.f32 %v226, %v238
      %v255 = vadd.f32 %v227, %v234
      %v256 = vadd.f32 %v228, %v238
      %v257 = vpack.c.bf16 %v243, %v241
      %v258 = vpack.c.bf16 %v244, %v242
      %v259 = vpack.c.bf16 %v247, %v245
      %v260 = vpack.c.bf16 %v248, %v246
      %v261 = vpack.c.bf16 %v251, %v249
      %v262 = vpack.c.bf16 %v252, %v250
      %v263 = vpack.c.bf16 %v255, %v253
      %v264 = vpack.c.bf16 %v256, %v254
      %v273 = vunpack.c.l.b16 %v257
      %v274 = vunpack.c.l.b16 %v258
      %v275 = vunpack.c.h.b16 %v257
      %v276 = vunpack.c.h.b16 %v258
      %v277 = vunpack.c.l.b16 %v259
      %v278 = vunpack.c.l.b16 %v260
      %v279 = vunpack.c.h.b16 %v259
      %v280 = vunpack.c.h.b16 %v260
      %v281 = vunpack.c.l.b16 %v261
      %v282 = vunpack.c.l.b16 %v262
      %v283 = vunpack.c.h.b16 %v261
      %v284 = vunpack.c.h.b16 %v262
      %v285 = vunpack.c.l.b16 %v263
      %v286 = vunpack.c.l.b16 %v264
      %v287 = vunpack.c.h.b16 %v263
      %v288 = vunpack.c.h.b16 %v264
      %v289 = vpack.c.b16 %v274, %v273
      %v290 = vpack.c.b16 %v276, %v275
      %v291 = vpack.c.b16 %v278, %v277
      %v292 = vpack.c.b16 %v280, %v279
      %v293 = vpack.c.b16 %v282, %v281
      %v294 = vpack.c.b16 %v284, %v283
      %v295 = vpack.c.b16 %v286, %v285
      %v296 = vpack.c.b16 %v288, %v287
      %305 = vst [vmem:[#allocation3] sm:$0xff] %v289
      %306 = vst [vmem:[#allocation3 + $0x8] sm:$0xff] %v290
      %307 = vst [vmem:[#allocation3 + $0x10] sm:$0xff] %v291
      %308 = vst [vmem:[#allocation3 + $0x18] sm:$0xff] %v292
      %309 = vst [vmem:[#allocation3 + $0x20] sm:$0xff] %v293
      %310 = vst [vmem:[#allocation3 + $0x28] sm:$0xff] %v294
      %311 = vst [vmem:[#allocation3 + $0x30] sm:$0xff] %v295
      %312 = vst [vmem:[#allocation3 + $0x38] sm:$0xff] %v296
    $region21: #{tpu_custom_call.1} parent=1 // pred_fallthru
      _
    // Predicated region
    $region22: #{tpu_custom_call.1} parent=1 // pred_check
      _
    $region23: #{tpu_custom_call.1} parent=1 // pred_check_branch
      %314 = sbr.rel (0) target = $region25
    $region24: #{tpu_custom_call.1} parent=1 // pred_region
      %s316 = ssub.s32 1024, 1024
      %317 = vsyncadd [#allocation4], %s316
      %s318 = sshll.u32 [#allocation3], 4
      %s319 = int_to_ptr.vmem [resolvable:$true] %s318
      %324 = dma.vmem_to_hbm [thread:$0]  %s319, 1024, %s3, [#allocation4], 128, 128, 8
    $region25: #{tpu_custom_call.1} parent=1 // pred_fallthru
      _
    // Predicated region
    $region26: #{tpu_custom_call.1} parent=1 // pred_check
      _
    $region27: #{tpu_custom_call.1} parent=1 // pred_check_branch
      %326 = sbr.rel (0) target = $region29
    $region28: #{tpu_custom_call.1} parent=1 // pred_region
      %327 = dma.done [#allocation4], 1024
    $region29: #{tpu_custom_call.1} parent=1 // pred_fallthru
      _
    %328 = vsyncpa [#allocation4], 1

</llo_original>
